<compile_context>
chip_gen: v5e
topology: v5e:2x2
jax: 0.10.0
libtpu: 0.0.40
codegen_flags: <defaults>
</compile_context>

<pallas_src>
import math

import jax
import jax.numpy as jnp
from jax.experimental import pallas as pl
from jax.experimental.pallas import tpu as pltpu


_TILE_BYTES_DEFAULT = 8 * 1024 * 1024   # per pipelined input buffer (x2 buffers)
_VMEM_LIMIT_BYTES = 32 * 1024 * 1024    # explicit scoped-VMEM limit (v5e/v6e/v7x safe)


def _lcm(a, b):
    return a * b // math.gcd(a, b)


# ---------------------------------------------------------------------------
# Fused kernel: per-(n, c in {0,1}, d) mask-source sums over (H, W) plus the
# masked squared-error sums over K and the mask values themselves.
# ---------------------------------------------------------------------------
def _fused_kernel(ym_ref, mat_ref, pred_ref, gt_ref, sq_ref, mask_ref, acc_ref):
    # ym_ref  : (1, 2, T_rows, L)  lane-dense tile of the mask source
    # mat_ref : (L, D)             one-hot lane->d regroup matrix (resident)
    # pred_ref/gt_ref : (1, 2, D, K)  resident across the reduction axis
    # sq_ref/mask_ref : (1, 2, D)  outputs, written once per n in the epilogue
    # acc_ref : (2, L) f32 scratch accumulator
    s = pl.program_id(1)

    @pl.when(s == 0)
    def _():
        acc_ref[...] = jnp.zeros_like(acc_ref)

    # Per-step partial reduce over the tile's sublane (row) axis.  d = lane % D
    # and every row starts at a multiple of D, so summing rows never mixes d's.
    acc_ref[...] += jnp.sum(ym_ref[0].astype(jnp.float32), axis=1)     # (2, L)

    @pl.when(s == pl.num_programs(1) - 1)
    def _():
        # Regroup lanes -> per-d sums with a tiny one-hot matmul.
        sums = jnp.dot(acc_ref[...], mat_ref[...],
                       preferred_element_type=jnp.float32)              # (2, D)
        mask = (sums > 0.0).astype(jnp.float32)                         # (2, D)
        diff = pred_ref[0].astype(jnp.float32) - gt_ref[0].astype(jnp.float32)
        sq_ref[0] = mask * jnp.sum(diff * diff, axis=-1)                 # (2, D)
        mask_ref[0] = mask


def _plan_row_tiles(rows, max_rows):
    """Pick (tile_rows, padded_rows): padded_rows % tile_rows == 0 and
    tile_rows is a multiple of 8 or equals padded_rows (full extent)."""
    if rows <= max_rows:
        return rows, rows                      # single step, full-extent block
    best = 0
    i = 1
    while i * i <= rows:
        if rows % i == 0:
            for t in (i, rows // i):
                if t <= max_rows and t % 8 == 0 and t > best:
                    best = t
        i += 1
    if best >= max(8, max_rows // 2):
        return best, rows                      # good divisor, no padding needed
    t = max(8, (max_rows // 8) * 8)
    return t, ((rows + t - 1) // t) * t        # pad rows up to a multiple of t


def _fused_masked_mse(y_mask, pred, gt, *, max_tile_bytes=_TILE_BYTES_DEFAULT):
    N, C, H, W, D = y_mask.shape
    Np, Cp, Dp, K = pred.shape
    assert (Np, Cp, Dp) == (N, 2, D) and gt.shape == pred.shape
    assert C >= 2

    L = _lcm(128, D)                 # lane width = whole number of d-cycles
    F = H * W * D
    itemsize = jnp.dtype(y_mask.dtype).itemsize

    rows0 = -(-F // L)               # cdiv
    max_rows = max(1, max_tile_bytes // (2 * L * itemsize))
    tile_rows, rows = _plan_row_tiles(rows0, max_rows)
    steps = rows // tile_rows

    ym = y_mask.reshape(N, C, F)     # free: contiguous flatten of (H, W, D)
    pad = rows * L - F
    if pad:
        # TODO(synk): one-time zero pad (extra HBM copy for awkward H*W*D); an
        # in-kernel masked tail would avoid it for very large inputs.
        ym = jnp.pad(ym, ((0, 0), (0, 0), (0, pad)))
    ym = ym.reshape(N, C, rows, L)

    # (L, D) one-hot regroup matrix: lane l contributes to d = l % D.
    regroup = (jnp.arange(L)[:, None] % D ==
               jnp.arange(D)[None, :]).astype(jnp.float32)

    # TODO(synk): for v7x with N <= 2, additionally split the row axis into two
    # "parallel" chunks so both TensorCores get work.
    cost = pl.CostEstimate(
        flops=int(N * 2 * rows * L),
        transcendentals=0,
        bytes_accessed=int(N * 2 * rows * L * itemsize
                           + 2 * N * 2 * D * K * jnp.dtype(pred.dtype).itemsize
                           + 2 * N * 2 * D * 4),
    )

    sq_sums, mask_vals = pl.pallas_call(
        _fused_kernel,
        out_shape=(jax.ShapeDtypeStruct((N, 2, D), jnp.float32),
                   jax.ShapeDtypeStruct((N, 2, D), jnp.float32)),
        grid_spec=pltpu.PrefetchScalarGridSpec(
            num_scalar_prefetch=0,
            grid=(N, steps),
            in_specs=[
                pl.BlockSpec((1, 2, tile_rows, L), lambda n, s: (n, 0, s, 0)),
                pl.BlockSpec((L, D), lambda n, s: (0, 0)),
                pl.BlockSpec((1, 2, D, K), lambda n, s: (n, 0, 0, 0)),
                pl.BlockSpec((1, 2, D, K), lambda n, s: (n, 0, 0, 0)),
            ],
            out_specs=[
                pl.BlockSpec((1, 2, D), lambda n, s: (n, 0, 0)),
                pl.BlockSpec((1, 2, D), lambda n, s: (n, 0, 0)),
            ],
            scratch_shapes=[pltpu.VMEM((2, L), jnp.float32)],
        ),
        compiler_params=pltpu.CompilerParams(
            dimension_semantics=("parallel", "arbitrary"),
            vmem_limit_bytes=_VMEM_LIMIT_BYTES),
        cost_estimate=cost,
    )(ym, regroup, pred, gt)
    return sq_sums, mask_vals


# ---------------------------------------------------------------------------
# Forward pass (matches MSE_Loss_masked.forward).
# ---------------------------------------------------------------------------
def mse_loss_masked(x, y, index_mse=1, index_mask=0, priority=1.0, *,
                    max_tile_bytes=_TILE_BYTES_DEFAULT):
    pred = x[index_mse]
    gt = y[index_mse]
    assert pred.shape == gt.shape
    y_mask = y[index_mask]
    N, _, _, _, D = y_mask.shape
    _, _, _, K = pred.shape
    # TODO(synk): degenerate (size-1) broadcasting of pred's channel/depth dims
    # against the (N, 2, D, 1) mask is not handled; exact shapes are required.

    sq_sums, mask_vals = _fused_masked_mse(y_mask, pred, gt,
                                           max_tile_bytes=max_tile_bytes)
    total_sq = jnp.sum(sq_sums)        # == sum(mask * (pred - gt) ** 2)
    total_mask = jnp.sum(mask_vals)    # == sum(mask)   (torch mask is (N,2,D,1))
    mean_loss = total_sq / float(N * 2 * D * K)            # torch.mean(loss)
    return mean_loss / (total_mask + 1e-8) * priority


def _reference(x, y, index_mse=1, index_mask=0, priority=1.0):
    """Pure-JAX mirror of the PyTorch forward."""
    pred = x[index_mse]
    gt = y[index_mse]
    mask = (jnp.sum(y[index_mask], axis=(2, 3)) > 0).astype(jnp.float32)
    mask = mask[..., None][:, :2]                           # (N, 2, D, 1)
    loss = mask * (pred - gt) ** 2
    return jnp.mean(loss) / (jnp.sum(mask) + 1e-8) * priority


if __name__ == "__main__":
    key = jax.random.PRNGKey(0)

    def run_case(case_key, N, C, H, W, D, K, max_tile_bytes):
        k1, k2, k3, k4, k5 = jax.random.split(case_key, 5)
        # Non-negative mask source with some (n, c, :, :, d) slices exactly 0.
        y_mask_src = jax.random.uniform(k1, (N, C, H, W, D), dtype=jnp.float32)
        keep = (jax.random.uniform(k2, (N, C, 1, 1, D)) > 0.4).astype(jnp.float32)
        y_mask_src = y_mask_src * keep
        pred = jax.random.normal(k3, (N, 2, D, K), dtype=jnp.float32)
        gt = jax.random.normal(k4, (N, 2, D, K), dtype=jnp.float32)
        x_mask_src = jax.random.uniform(k5, (N, C, H, W, D), dtype=jnp.float32)
        x = [x_mask_src, pred]
        y = [y_mask_src, gt]

        out = jax.block_until_ready(
            mse_loss_masked(x, y, index_mse=1, index_mask=0, priority=1.0,
                            max_tile_bytes=max_tile_bytes))
        ref = jax.block_until_ready(_reference(x, y))
        assert jnp.allclose(out, ref, rtol=1e-4, atol=1e-6), (out, ref)

    k_a, k_b = jax.random.split(key)
    # Case A: H*W*D a multiple of 128 (no padding), single reduction step.
    run_case(k_a, N=2, C=4, H=8, W=8, D=8, K=4,
             max_tile_bytes=_TILE_BYTES_DEFAULT)
    # Case B: awkward H*W*D (needs the zero pad) with a tiny tile budget to
    # force the multi-step accumulation path.
    run_case(k_b, N=2, C=4, H=17, W=9, D=8, K=5, max_tile_bytes=8 * 1024)

    print("KERNEL_OK")
</pallas_src>

<mosaic_0001>
module attributes {stable_mosaic.version = 11 : i64} {
  func.func @_fused_kernel(%arg0: i32, %arg1: i32, %arg2: memref<1x2x4x128xf32, #tpu.memory_space<vmem>>, %arg3: memref<128x8xf32, #tpu.memory_space<vmem>>, %arg4: memref<1x2x8x4xf32, #tpu.memory_space<vmem>>, %arg5: memref<1x2x8x4xf32, #tpu.memory_space<vmem>>, %arg6: memref<1x2x8xf32, #tpu.memory_space<vmem>>, %arg7: memref<1x2x8xf32, #tpu.memory_space<vmem>>, %arg8: memref<2x128xf32, #tpu.memory_space<vmem>>) attributes {dimension_semantics = [#tpu.dimension_semantics<parallel>, #tpu.dimension_semantics<arbitrary>], iteration_bounds = array<i64: 2, 1>, scalar_prefetch = 0 : i64, scratch_operands = 1 : i64, tpu.core_type = #tpu.core_type<tc>, window_params = [{transform_indices = @transform_0, window_bounds = array<i64: 1, 2, 4, 128>}, {pipeline_mode = #tpu.pipeline_mode<synchronous>, transform_indices = @transform_1, window_bounds = array<i64: 128, 8>}, {transform_indices = @transform_2, window_bounds = array<i64: 1, 2, 8, 4>}, {transform_indices = @transform_3, window_bounds = array<i64: 1, 2, 8, 4>}, {transform_indices = @transform_4, window_bounds = array<i64: 1, 2, 8>}, {transform_indices = @transform_5, window_bounds = array<i64: 1, 2, 8>}]} {
    %c0_i32 = arith.constant 0 : i32
    %0 = arith.cmpi eq, %arg1, %c0_i32 : i32
    %1 = arith.extui %0 : i1 to i32
    %c0_i32_0 = arith.constant 0 : i32
    %2 = arith.cmpi ne, %1, %c0_i32_0 : i32
    scf.if %2 {
      %cst_10 = arith.constant 0.000000e+00 : f32
      %12 = vector.broadcast %cst_10 : f32 to vector<2x128xf32>
      %c0_11 = arith.constant 0 : index
      %c0_12 = arith.constant 0 : index
      %13 = vector.load %arg8[%c0_11, %c0_12] : memref<2x128xf32, #tpu.memory_space<vmem>>, vector<2x128xf32>
      tpu.vector_store %arg8[%c0_11, %c0_12], %12 {strides = array<i32>} : memref<2x128xf32, #tpu.memory_space<vmem>>, vector<2x128xf32>,
    } else {
    }
    %c0 = arith.constant 0 : index
    %c0_1 = arith.constant 0 : index
    %3 = vector.load %arg8[%c0, %c0_1] : memref<2x128xf32, #tpu.memory_space<vmem>>, vector<2x128xf32>
    %c0_2 = arith.constant 0 : index
    %c0_3 = arith.constant 0 : index
    %c0_4 = arith.constant 0 : index
    %c0_5 = arith.constant 0 : index
    %4 = vector.load %arg2[%c0_2, %c0_3, %c0_4, %c0_5] : memref<1x2x4x128xf32, #tpu.memory_space<vmem>>, vector<1x2x4x128xf32>
    %5 = vector.shape_cast %4 : vector<1x2x4x128xf32> to vector<2x4x128xf32>
    %cst = arith.constant dense<0.000000e+00> : vector<2x128xf32>
    %6 = vector.multi_reduction <add>, %5, %cst [1] : vector<2x4x128xf32> to vector<2x128xf32>
    %7 = arith.addf %3, %6 : vector<2x128xf32>
    %c0_6 = arith.constant 0 : index
    %c0_7 = arith.constant 0 : index
    %8 = vector.load %arg8[%c0_6, %c0_7] : memref<2x128xf32, #tpu.memory_space<vmem>>, vector<2x128xf32>
    tpu.vector_store %arg8[%c0_6, %c0_7], %7 {strides = array<i32>} : memref<2x128xf32, #tpu.memory_space<vmem>>, vector<2x128xf32>,
    %c0_i32_8 = arith.constant 0 : i32
    %9 = arith.cmpi eq, %arg1, %c0_i32_8 : i32
    %10 = arith.extui %9 : i1 to i32
    %c0_i32_9 = arith.constant 0 : i32
    %11 = arith.cmpi ne, %10, %c0_i32_9 : i32
    scf.if %11 {
      %c0_10 = arith.constant 0 : index
      %c0_11 = arith.constant 0 : index
      %12 = vector.load %arg8[%c0_10, %c0_11] : memref<2x128xf32, #tpu.memory_space<vmem>>, vector<2x128xf32>
      %c0_12 = arith.constant 0 : index
      %c0_13 = arith.constant 0 : index
      %13 = vector.load %arg3[%c0_12, %c0_13] : memref<128x8xf32, #tpu.memory_space<vmem>>, vector<128x8xf32>
      %cst_14 = arith.constant dense<0.000000e+00> : vector<2x8xf32>
      %14 = tpu.matmul %12, %13, %cst_14 {dimension_numbers = #tpu.dot_dimension_numbers<[1], [0], [0], [1], [0, 0, 1, 1], [], []>} : vector<2x128xf32>, vector<128x8xf32>, vector<2x8xf32> -> vector<2x8xf32>
      %cst_15 = arith.constant 0.000000e+00 : f32
      %15 = vector.broadcast %cst_15 : f32 to vector<2x8xf32>
      %16 = arith.cmpf ogt, %14, %15 : vector<2x8xf32>
      %17 = arith.extui %16 : vector<2x8xi1> to vector<2x8xi32>
      %18 = arith.sitofp %17 : vector<2x8xi32> to vector<2x8xf32>
      %c0_16 = arith.constant 0 : index
      %c0_17 = arith.constant 0 : index
      %c0_18 = arith.constant 0 : index
      %c0_19 = arith.constant 0 : index
      %19 = vector.load %arg4[%c0_16, %c0_17, %c0_18, %c0_19] : memref<1x2x8x4xf32, #tpu.memory_space<vmem>>, vector<1x2x8x4xf32>
      %20 = vector.shape_cast %19 : vector<1x2x8x4xf32> to vector<2x8x4xf32>
      %c0_20 = arith.constant 0 : index
      %c0_21 = arith.constant 0 : index
      %c0_22 = arith.constant 0 : index
      %c0_23 = arith.constant 0 : index
      %21 = vector.load %arg5[%c0_20, %c0_21, %c0_22, %c0_23] : memref<1x2x8x4xf32, #tpu.memory_space<vmem>>, vector<1x2x8x4xf32>
      %22 = vector.shape_cast %21 : vector<1x2x8x4xf32> to vector<2x8x4xf32>
      %23 = arith.subf %20, %22 : vector<2x8x4xf32>
      %24 = arith.mulf %23, %23 : vector<2x8x4xf32>
      %cst_24 = arith.constant dense<0.000000e+00> : vector<2x8xf32>
      %25 = vector.multi_reduction <add>, %24, %cst_24 [2] : vector<2x8x4xf32> to vector<2x8xf32>
      %26 = arith.mulf %18, %25 : vector<2x8xf32>
      %c0_25 = arith.constant 0 : index
      %c0_26 = arith.constant 0 : index
      %c0_27 = arith.constant 0 : index
      %27 = vector.load %arg6[%c0_25, %c0_26, %c0_27] : memref<1x2x8xf32, #tpu.memory_space<vmem>>, vector<1x2x8xf32>
      %28 = vector.shape_cast %27 : vector<1x2x8xf32> to vector<2x8xf32>
      %29 = vector.shape_cast %26 : vector<2x8xf32> to vector<1x2x8xf32>
      tpu.vector_store %arg6[%c0_25, %c0_26, %c0_27], %29 {strides = array<i32>} : memref<1x2x8xf32, #tpu.memory_space<vmem>>, vector<1x2x8xf32>,
      %c0_28 = arith.constant 0 : index
      %c0_29 = arith.constant 0 : index
      %c0_30 = arith.constant 0 : index
      %30 = vector.load %arg7[%c0_28, %c0_29, %c0_30] : memref<1x2x8xf32, #tpu.memory_space<vmem>>, vector<1x2x8xf32>
      %31 = vector.shape_cast %30 : vector<1x2x8xf32> to vector<2x8xf32>
      %32 = vector.shape_cast %18 : vector<2x8xf32> to vector<1x2x8xf32>
      tpu.vector_store %arg7[%c0_28, %c0_29, %c0_30], %32 {strides = array<i32>} : memref<1x2x8xf32, #tpu.memory_space<vmem>>, vector<1x2x8xf32>,
    } else {
    }
    return
  }
  func.func @transform_0(%arg0: i32, %arg1: i32) -> (i32, i32, i32, i32) {
    %c0_i32 = arith.constant 0 : i32
    %c0_i32_0 = arith.constant 0 : i32
    %c0_i32_1 = arith.constant 0 : i32
    return %arg0, %c0_i32, %arg1, %c0_i32_0 : i32, i32, i32, i32
  }
  func.func @transform_1(%arg0: i32, %arg1: i32) -> (i32, i32) {
    %c0_i32 = arith.constant 0 : i32
    %c0_i32_0 = arith.constant 0 : i32
    %c0_i32_1 = arith.constant 0 : i32
    return %c0_i32, %c0_i32_0 : i32, i32
  }
  func.func @transform_2(%arg0: i32, %arg1: i32) -> (i32, i32, i32, i32) {
    %c0_i32 = arith.constant 0 : i32
    %c0_i32_0 = arith.constant 0 : i32
    %c0_i32_1 = arith.constant 0 : i32
    %c0_i32_2 = arith.constant 0 : i32
    return %arg0, %c0_i32, %c0_i32_0, %c0_i32_1 : i32, i32, i32, i32
  }
  func.func @transform_3(%arg0: i32, %arg1: i32) -> (i32, i32, i32, i32) {
    %c0_i32 = arith.constant 0 : i32
    %c0_i32_0 = arith.constant 0 : i32
    %c0_i32_1 = arith.constant 0 : i32
    %c0_i32_2 = arith.constant 0 : i32
    return %arg0, %c0_i32, %c0_i32_0, %c0_i32_1 : i32, i32, i32, i32
  }
  func.func @transform_4(%arg0: i32, %arg1: i32) -> (i32, i32, i32) {
    %c0_i32 = arith.constant 0 : i32
    %c0_i32_0 = arith.constant 0 : i32
    %c0_i32_1 = arith.constant 0 : i32
    return %arg0, %c0_i32, %c0_i32_0 : i32, i32, i32
  }
  func.func @transform_5(%arg0: i32, %arg1: i32) -> (i32, i32, i32) {
    %c0_i32 = arith.constant 0 : i32
    %c0_i32_0 = arith.constant 0 : i32
    %c0_i32_1 = arith.constant 0 : i32
    return %arg0, %c0_i32, %c0_i32_0 : i32, i32, i32
  }
}

</mosaic_0001>

<llo_original>
// kernel: tpu_custom_call.1
$region0: #{tpu_custom_call.1}
  #allocation0 [shape = 'u32[]', space=smem, size = 0x4, offset = 0x4, fixed_abs, tag = 'smem constant byte address 0x4 - core index']
  #allocation1 [shape = 'u32[72,128]{1,0:T(1,128)}', space=vmem, size = 0x9000, scoped, tag = 'internal scratch']
  #allocation2 [shape = 'f32[2,128]{1,0:T(2,128)}', space=vmem, size = 0x400, scoped, tag = 'scratch operand']
  %s0 = inlined_call_operand.vmem [shape: f32[2,4,4,128], index: 0, kind: input, shape index: {}]
  %s1 = inlined_call_operand.vmem [shape: f32[128,8], index: 1, kind: input, shape index: {}]
  %s2 = inlined_call_operand.vmem [shape: f32[2,2,8,4], index: 2, kind: input, shape index: {}]
  %s3 = inlined_call_operand.vmem [shape: f32[2,2,8,4], index: 3, kind: input, shape index: {}]
  %s4 = inlined_call_operand.hbm [shape: f32[2,2,8], index: 4, kind: output, shape index: {0}]
  %s5 = inlined_call_operand.hbm [shape: f32[2,2,8], index: 5, kind: output, shape index: {1}]
  %6 = xla_tuple %s4, %s5
  %s7 = sld [smem:[#allocation0]]
  $region65: #{tpu_custom_call.1} parent=0
    _
  %s9 = ssub.s32 1, %s7
  %s10 = scalar_select 0, %s9, %s7
  $region1: #{tpu_custom_call.1} parent=0
    #allocation3 [shape = 'u8[2048]{0}', space=vmem, size = 0x800, scoped, tag = 'output window, operand 0']
    #allocation4 [shape = 's32[2]{0}', space=sflag, size = 0x8, scoped, tag = 'scoped memory for tpu_custom_call.1']
    #allocation5 [shape = 'u8[2048]{0}', space=vmem, size = 0x800, scoped, tag = 'output window, operand 1']
    #allocation6 [shape = 's32[2]{0}', space=sflag, size = 0x8, scoped, tag = 'scoped memory for tpu_custom_call.1']
    %11 = vsyncpa [#allocation4], 0
    %s12 = scalar_lea.sflag [#allocation4], 1
    %13 = vsyncpa %s12, 0
    %14 = vsyncpa [#allocation6], 0
    %s15 = scalar_lea.sflag [#allocation6], 1
    %16 = vsyncpa %s15, 0
    loop: start=0, step=1, limit=4
    $region2: #{tpu_custom_call.1} parent=1 // loop_pre_header
      _
    $region3: #{tpu_custom_call.1} parent=1 // loop_header
      %s18 = sphi 0, %s22
      %p19 = scmp.ge.s32.totalorder %s18, 4
      %s25 = sphi 0, %s37
      %s26 = sphi 0, %s33
      %s27 = sphi 0, %s25
      %s28 = sphi 0, %s26
      %s29 = sphi 0, %s27
      %s30 = sphi 0, %s28
      %s42 = sphi 0, %s44
      %s45 = sphi 0, %s42
      %s46 = sphi 0, %s45
      %s62 = sphi 0, %s46
      %s66 = sphi 0, %s66
      %s68 = sphi 0, %s66
      %s69 = sphi 0, %s68
      %s83 = sphi 0, %s69
      %s89 = sphi 0, %s91
      %s92 = sphi 0, %s89
      %s93 = sphi 0, %s92
      %s109 = sphi 0, %s93
      %s115 = sphi 0, %s117
      %s118 = sphi 0, %s115
      %s119 = sphi 0, %s118
      %s135 = sphi 0, %s119
      %s141 = sphi 0, %s143
      %s144 = sphi 0, %s141
      %s145 = sphi 0, %s144
      %s161 = sphi 0, %s145
      %s167 = sphi 0, %s169
      %s170 = sphi 0, %s167
      %s171 = sphi 0, %s170
      %s187 = sphi 0, %s171
    $region4: #{tpu_custom_call.1} parent=1 // loop_header_branch
      %21 = sbr.rel (%p19) target = $region8
    $region5: #{tpu_custom_call.1} parent=1 // loop_body
      %s23 = ssub.s32 %s18, 1
      %s24 = ssub.s32 %s18, 2
      %s31 = sadd.s32 1, %s26
      %p32 = scmp.ge.s32.totalorder %s31, 1
      %s33 = scalar_select %p32, 0, %s31
      %s34 = sadd.s32 1, %s25
      %s35 = scalar_select %p32, %s34, %s25
      %p36 = scmp.ge.s32.totalorder %s35, 2
      %s37 = scalar_select %p36, 0, %s35
      %s38 = ssub.s32 %s25, %s37
      %s39 = ssub.s32 %s26, %s33
      %s40 = sor.u32 %s38, %s39
      %p41 = scmp.eq.s32.totalorder %s40, 0
      %s43 = sadd.s32 %s42, 1
      %s44 = scalar_select %p41, %s42, %s43
      %p47 = pneg %p41
      %p48 = scmp.eq.s32.totalorder %s18, 1
      %p49 = por %p47, %p48
      %p50 = scmp.ne.s32.totalorder %s42, %s45
      %p51 = scmp.eq.s32.totalorder %s18, 0
      %p52 = por %p50, %p51
      %p53 = scmp.ne.s32.totalorder %s42, %s45
      %p54 = scmp.eq.s32.totalorder %s23, 1
      %p55 = por %p53, %p54
      %p56 = scmp.ne.s32.totalorder %s45, %s46
      %p57 = scmp.eq.s32.totalorder %s23, 0
      %p58 = por %p56, %p57
      %p59 = scmp.ne.s32.totalorder %s45, %s46
      %p60 = scmp.eq.s32.totalorder %s24, 1
      %p61 = por %p59, %p60
      %p63 = scmp.ne.s32.totalorder %s46, %s62
      %p64 = scmp.eq.s32.totalorder %s24, 0
      %p65 = por %p63, %p64
      %s67 = sadd.s32 %s66, 1
      %p70 = scmp.eq.s32.totalorder %s18, 1
      %p71 = scmp.ne.s32.totalorder %s66, %s68
      %p72 = scmp.eq.s32.totalorder %s18, 0
      %p73 = por %p71, %p72
      %p74 = scmp.ne.s32.totalorder %s66, %s68
      %p75 = scmp.eq.s32.totalorder %s23, 1
      %p76 = por %p74, %p75
      %p77 = scmp.ne.s32.totalorder %s68, %s69
      %p78 = scmp.eq.s32.totalorder %s23, 0
      %p79 = por %p77, %p78
      %p80 = scmp.ne.s32.totalorder %s68, %s69
      %p81 = scmp.eq.s32.totalorder %s24, 1
      %p82 = por %p80, %p81
      %p84 = scmp.ne.s32.totalorder %s69, %s83
      %p85 = scmp.eq.s32.totalorder %s24, 0
      %p86 = por %p84, %p85
      %s87 = ssub.s32 %s25, %s37
      %p88 = scmp.eq.s32.totalorder %s87, 0
      %s90 = sadd.s32 %s89, 1
      %s91 = scalar_select %p88, %s89, %s90
      %p94 = pneg %p88
      %p95 = scmp.eq.s32.totalorder %s18, 1
      %p96 = por %p94, %p95
      %p97 = scmp.ne.s32.totalorder %s89, %s92
      %p98 = scmp.eq.s32.totalorder %s18, 0
      %p99 = por %p97, %p98
      %p100 = scmp.ne.s32.totalorder %s89, %s92
      %p101 = scmp.eq.s32.totalorder %s23, 1
      %p102 = por %p100, %p101
      %p103 = scmp.ne.s32.totalorder %s92, %s93
      %p104 = scmp.eq.s32.totalorder %s23, 0
      %p105 = por %p103, %p104
      %p106 = scmp.ne.s32.totalorder %s92, %s93
      %p107 = scmp.eq.s32.totalorder %s24, 1
      %p108 = por %p106, %p107
      %p110 = scmp.ne.s32.totalorder %s93, %s109
      %p111 = scmp.eq.s32.totalorder %s24, 0
      %p112 = por %p110, %p111
      %s113 = ssub.s32 %s25, %s37
      %p114 = scmp.eq.s32.totalorder %s113, 0
      %s116 = sadd.s32 %s115, 1
      %s117 = scalar_select %p114, %s115, %s116
      %p120 = pneg %p114
      %p121 = scmp.eq.s32.totalorder %s18, 1
      %p122 = por %p120, %p121
      %p123 = scmp.ne.s32.totalorder %s115, %s118
      %p124 = scmp.eq.s32.totalorder %s18, 0
      %p125 = por %p123, %p124
      %p126 = scmp.ne.s32.totalorder %s115, %s118
      %p127 = scmp.eq.s32.totalorder %s23, 1
      %p128 = por %p126, %p127
      %p129 = scmp.ne.s32.totalorder %s118, %s119
      %p130 = scmp.eq.s32.totalorder %s23, 0
      %p131 = por %p129, %p130
      %p132 = scmp.ne.s32.totalorder %s118, %s119
      %p133 = scmp.eq.s32.totalorder %s24, 1
      %p134 = por %p132, %p133
      %p136 = scmp.ne.s32.totalorder %s119, %s135
      %p137 = scmp.eq.s32.totalorder %s24, 0
      %p138 = por %p136, %p137
      %s139 = ssub.s32 %s25, %s37
      %p140 = scmp.eq.s32.totalorder %s139, 0
      %s142 = sadd.s32 %s141, 1
      %s143 = scalar_select %p140, %s141, %s142
      %p146 = pneg %p140
      %p147 = scmp.eq.s32.totalorder %s18, 1
      %p148 = por %p146, %p147
      %p149 = scmp.ne.s32.totalorder %s141, %s144
      %p150 = scmp.eq.s32.totalorder %s18, 0
      %p151 = por %p149, %p150
      %p152 = scmp.ne.s32.totalorder %s141, %s144
      %p153 = scmp.eq.s32.totalorder %s23, 1
      %p154 = por %p152, %p153
      %p155 = scmp.ne.s32.totalorder %s144, %s145
      %p156 = scmp.eq.s32.totalorder %s23, 0
      %p157 = por %p155, %p156
      %p158 = scmp.ne.s32.totalorder %s144, %s145
      %p159 = scmp.eq.s32.totalorder %s24, 1
      %p160 = por %p158, %p159
      %p162 = scmp.ne.s32.totalorder %s145, %s161
      %p163 = scmp.eq.s32.totalorder %s24, 0
      %p164 = por %p162, %p163
      %s165 = ssub.s32 %s25, %s37
      %p166 = scmp.eq.s32.totalorder %s165, 0
      %s168 = sadd.s32 %s167, 1
      %s169 = scalar_select %p166, %s167, %s168
      %p172 = pneg %p166
      %p173 = scmp.eq.s32.totalorder %s18, 1
      %p174 = por %p172, %p173
      %p175 = scmp.ne.s32.totalorder %s167, %s170
      %p176 = scmp.eq.s32.totalorder %s18, 0
      %p177 = por %p175, %p176
      %p178 = scmp.ne.s32.totalorder %s167, %s170
      %p179 = scmp.eq.s32.totalorder %s23, 1
      %p180 = por %p178, %p179
      %p181 = scmp.ne.s32.totalorder %s170, %s171
      %p182 = scmp.eq.s32.totalorder %s23, 0
      %p183 = por %p181, %p182
      %p184 = scmp.ne.s32.totalorder %s170, %s171
      %p185 = scmp.eq.s32.totalorder %s24, 1
      %p186 = por %p184, %p185
      %p188 = scmp.ne.s32.totalorder %s171, %s187
      %p189 = scmp.eq.s32.totalorder %s24, 0
      %p190 = por %p188, %p189
      %p191 = scmp.le.s32.totalorder 1, %s18
      %p192 = scmp.lt.s32.totalorder %s18, 3
      %p193 = pnand %p191, %p192
      %p194 = pneg %p193
      // Predicated region
      $region9: #{tpu_custom_call.1} parent=5 // pred_check
        _
      $region10: #{tpu_custom_call.1} parent=5 // pred_check_branch
        %196 = sbr.rel (%p193) target = $region12
      $region11: #{tpu_custom_call.1} parent=5 // pred_region
        %s197 = ssub.s32 %s18, 1
        // Predicated region
        $region13: #{tpu_custom_call.1} parent=11 // pred_check
          %p198 = pneg %p79
        $region14: #{tpu_custom_call.1} parent=11 // pred_check_branch
          %200 = sbr.rel (%p198) target = $region16
        $region15: #{tpu_custom_call.1} parent=11 // pred_region
          _
        $region16: #{tpu_custom_call.1} parent=11 // pred_fallthru
          _
      $region12: #{tpu_custom_call.1} parent=5 // pred_fallthru
        _
      %p201 = scmp.lt.s32.totalorder %s18, 2
      // Predicated region
      $region17: #{tpu_custom_call.1} parent=5 // pred_check
        %p202 = pneg %p201
      $region18: #{tpu_custom_call.1} parent=5 // pred_check_branch
        %204 = sbr.rel (%p202) target = $region20
      $region19: #{tpu_custom_call.1} parent=5 // pred_region
        // Predicated region
        $region21: #{tpu_custom_call.1} parent=19 // pred_check
          %p205 = pneg %p52
        $region22: #{tpu_custom_call.1} parent=19 // pred_check_branch
          %207 = sbr.rel (%p205) target = $region24
        $region23: #{tpu_custom_call.1} parent=19 // pred_region
          %p208 = scmp.lt.s32.totalorder %s25, 1
          %s209 = scalar_select %p208, %s25, 1
          %p210 = scmp.lt.s32.totalorder %s26, 0
          %s211 = scalar_select %p210, %s26, 0
          %s212 = smul.addr %s209, 4
          %s213 = sadd.s32 %s211, %s212
          %s214 = smul.addr %s213, 4
          %s215 = scalar_lea.vmem %s0, %s214
        $region24: #{tpu_custom_call.1} parent=19 // pred_fallthru
          _
        // Predicated region
        $region25: #{tpu_custom_call.1} parent=19 // pred_check
          %p216 = pneg %p99
        $region26: #{tpu_custom_call.1} parent=19 // pred_check_branch
          %218 = sbr.rel (%p216) target = $region28
        $region27: #{tpu_custom_call.1} parent=19 // pred_region
          %p219 = scmp.lt.s32.totalorder %s25, 1
          %s220 = scalar_select %p219, %s25, 1
          %s221 = smul.addr %s220, 2
          %s222 = smul.addr %s221, 8
          %s223 = scalar_lea.vmem %s2, %s222
        $region28: #{tpu_custom_call.1} parent=19 // pred_fallthru
          _
        // Predicated region
        $region29: #{tpu_custom_call.1} parent=19 // pred_check
          %p224 = pneg %p125
        $region30: #{tpu_custom_call.1} parent=19 // pred_check_branch
          %226 = sbr.rel (%p224) target = $region32
        $region31: #{tpu_custom_call.1} parent=19 // pred_region
          %p227 = scmp.lt.s32.totalorder %s25, 1
          %s228 = scalar_select %p227, %s25, 1
          %s229 = smul.addr %s228, 2
          %s230 = smul.addr %s229, 8
          %s231 = scalar_lea.vmem %s3, %s230
        $region32: #{tpu_custom_call.1} parent=19 // pred_fallthru
          _
      $region20: #{tpu_custom_call.1} parent=5 // pred_fallthru
        _
      %p232 = scmp.le.s32.totalorder 1, %s18
      %p233 = scmp.lt.s32.totalorder %s18, 3
      %p234 = pnand %p232, %p233
      %p235 = pneg %p234
      // Predicated region
      $region33: #{tpu_custom_call.1} parent=5 // pred_check
        _
      $region34: #{tpu_custom_call.1} parent=5 // pred_check_branch
        %237 = sbr.rel (%p234) target = $region36
      $region35: #{tpu_custom_call.1} parent=5 // pred_region
        %s238 = ssub.s32 %s18, 1
        %p239 = scmp.lt.s32.totalorder %s27, 1
        %s240 = scalar_select %p239, %s27, 1
        %p241 = scmp.lt.s32.totalorder %s28, 0
        %s242 = scalar_select %p241, %s28, 0
        %s243 = smul.addr %s240, 4
        %s244 = sadd.s32 %s242, %s243
        %s245 = smul.addr %s244, 4
        %s246 = scalar_lea.vmem %s0, %s245
        %p247 = pneg %p58
        %p248 = pneg %p55
        %p249 = pneg %p79
        %p250 = pneg %p76
        %p251 = scmp.lt.s32.totalorder %s27, 1
        %s252 = scalar_select %p251, %s27, 1
        %s253 = smul.addr %s252, 2
        %s254 = smul.addr %s253, 8
        %s255 = scalar_lea.vmem %s2, %s254
        %p256 = pneg %p105
        %p257 = pneg %p102
        %p258 = scmp.lt.s32.totalorder %s27, 1
        %s259 = scalar_select %p258, %s27, 1
        %s260 = smul.addr %s259, 2
        %s261 = smul.addr %s260, 8
        %s262 = scalar_lea.vmem %s3, %s261
        %p263 = pneg %p131
        %p264 = pneg %p128
        %p265 = pneg %p157
        %p266 = pneg %p154
        %s267 = sand.u32 %s144, 1
        %s268 = scalar_lea.sflag [#allocation4], %s267
        %s269 = sand.u32 %s144, 1
        %s270 = smul.addr %s269, 2
        %s271 = scalar_lea.vmem [#allocation3], %s270
        %p272 = pneg %p183
        %p273 = pneg %p180
        %s274 = sand.u32 %s170, 1
        %s275 = scalar_lea.sflag [#allocation6], %s274
        %s276 = sand.u32 %s170, 1
        %s277 = smul.addr %s276, 2
        %s278 = scalar_lea.vmem [#allocation5], %s277
        %p279 = scmp.lt.s32.totalorder %s27, 1
        %s280 = scalar_select %p279, %s27, 1
        %p281 = scmp.lt.s32.totalorder %s28, 0
        %s282 = scalar_select %p281, %s28, 0
        %s283 = smul.addr %s280, 4
        %s284 = sadd.s32 %s282, %s283
        %s285 = smul.addr %s284, 4
        %s286 = scalar_lea.vmem %s0, %s285
        %p287 = scmp.lt.s32.totalorder %s27, 1
        %s288 = scalar_select %p287, %s27, 1
        %s289 = smul.addr %s288, 2
        %s290 = smul.addr %s289, 8
        %s291 = scalar_lea.vmem %s2, %s290
        %p292 = scmp.lt.s32.totalorder %s27, 1
        %s293 = scalar_select %p292, %s27, 1
        %s294 = smul.addr %s293, 2
        %s295 = smul.addr %s294, 8
        %s296 = scalar_lea.vmem %s3, %s295
        %p297 = scmp.eq.s32.totalorder %s28, 0
        // Predicated region
        $region37: #{tpu_custom_call.1} parent=35 // pred_check
          %p298 = pneg %p297
        $region38: #{tpu_custom_call.1} parent=35 // pred_check_branch
          %300 = sbr.rel (%p298) target = $region40
        $region39: #{tpu_custom_call.1} parent=35 // pred_region
          %301 = vst [vmem:[#allocation2] sm:$0x3] 0.0
        $region40: #{tpu_custom_call.1} parent=35 // pred_fallthru
          _
        %v302 = vld [vmem:[#allocation2] sm:$0x3]
        %v303 = vld [vmem:[%s286] sm:$0xf]
        %v304 = vld [vmem:[%s286 + $0x4] sm:$0xf]
        %vm305 = vcmask 1043456
        %v306 = vsel %vm305, %v303, 0.0
        %v307 = vrot.slane %v306, 4
        %v308 = vadd.f32 %v306, %v307
        %v309 = vrot.slane %v308, 2
        %v310 = vadd.f32 %v308, %v309
        %v311 = vrot.slane %v310, 1
        %v312 = vadd.f32 %v310, %v311
        %v313 = vsel %vm305, %v304, 0.0
        %v314 = vrot.slane %v313, 4
        %v315 = vadd.f32 %v313, %v314
        %v316 = vrot.slane %v315, 2
        %v317 = vadd.f32 %v315, %v316
        %v318 = vrot.slane %v317, 1
        %v319 = vadd.f32 %v317, %v318
        %vm322 = vcmask 1041409
        %v323 = vsel %vm322, %v319, %v312
        %v325 = vadd.f32 %v302, %v323
        %326 = vst [vmem:[#allocation2] sm:$0x3] %v325
        // Predicated region
        $region41: #{tpu_custom_call.1} parent=35 // pred_check
          %p327 = pneg %p297
        $region42: #{tpu_custom_call.1} parent=35 // pred_check_branch
          %329 = sbr.rel (%p327) target = $region44
        $region43: #{tpu_custom_call.1} parent=35 // pred_region
          %v330 = vld [vmem:[#allocation2] sm:$0x3]
          %v331 = vld [vmem:[%s1] sm:$0xff]
          %v332 = vld [vmem:[%s1 + $0x8] sm:$0xff]
          %v333 = vld [vmem:[%s1 + $0x10] sm:$0xff]
          %v334 = vld [vmem:[%s1 + $0x18] sm:$0xff]
          %v335 = vld [vmem:[%s1 + $0x20] sm:$0xff]
          %v336 = vld [vmem:[%s1 + $0x28] sm:$0xff]
          %v337 = vld [vmem:[%s1 + $0x30] sm:$0xff]
          %v338 = vld [vmem:[%s1 + $0x38] sm:$0xff]
          %v339 = vld [vmem:[%s1 + $0x40] sm:$0xff]
          %v340 = vld [vmem:[%s1 + $0x48] sm:$0xff]
          %v341 = vld [vmem:[%s1 + $0x50] sm:$0xff]
          %v342 = vld [vmem:[%s1 + $0x58] sm:$0xff]
          %v343 = vld [vmem:[%s1 + $0x60] sm:$0xff]
          %v344 = vld [vmem:[%s1 + $0x68] sm:$0xff]
          %v345 = vld [vmem:[%s1 + $0x70] sm:$0xff]
          %v346 = vld [vmem:[%s1 + $0x78] sm:$0xff]
          %347 = vmatpush.msra.mxu0 %v346
          %348 = vmatpush.msra.mxu0 %v345
          %349 = vmatpush.msra.mxu0 %v344
          %350 = vmatpush.msra.mxu0 %v343
          %351 = vmatpush.msra.mxu0 %v342
          %352 = vmatpush.msra.mxu0 %v341
          %353 = vmatpush.msra.mxu0 %v340
          %354 = vmatpush.msra.mxu0 %v339
          %355 = vmatpush.msra.mxu0 %v338
          %356 = vmatpush.msra.mxu0 %v337
          %357 = vmatpush.msra.mxu0 %v336
          %358 = vmatpush.msra.mxu0 %v335
          %359 = vmatpush.msra.mxu0 %v334
          %360 = vmatpush.msra.mxu0 %v333
          %361 = vmatpush.msra.mxu0 %v332
          %362 = vmatpush.msra.mxu0 %v331
          %363 = vmatmul.f32.gmra.mxu0 %v330
          %v364 = vpop.f32.mrf.mxu0
          %v365 = vadd.f32 0.0, %v364
          %366 = vdwg.mxu0
          %vm367 = vcmp.gt.f32.partialorder %v365, 0.0
          %v368 = vsel %vm367, 1, 0
          %v369 = vcvt.s32.f32 %v368
          %v370 = vld [vmem:[%s291] sm:$0xff]
          %v371 = vld [vmem:[%s291 + $0x8] sm:$0xff]
          %v372 = vld [vmem:[%s296] sm:$0xff]
          %v373 = vld [vmem:[%s296 + $0x8] sm:$0xff]
          %v374 = vsub.f32 %v370, %v372
          %v375 = vsub.f32 %v371, %v373
          %v376 = vmul.f32 %v374, %v374
          %v377 = vmul.f32 %v375, %v375
          %vm378 = vcmask 31744
          %v379 = vsel %vm378, %v376, 0.0
          %380 = vadd.xlane.f32.xlu0 %v379
          %v381 = vpop.xlane.xlu0 %380
          %v382 = vsel %vm378, %v377, 0.0
          %383 = vadd.xlane.f32.xlu0 %v382
          %v384 = vpop.xlane.xlu0 %383
          %v387 = vlaneseq
          %v388 = vand.u32 %v387, 127
          %v389 = vperm.slane %v381, %v388
          %v390 = vperm.slane %v384, %v388
          %v391 = vsel %vm322, %v390, %v389
          %v393 = vmul.f32 %v369, %v391
          %vm394 = vcmask 58368
          %395 = vst.msk [vmem:[%s271] sm:$0x3] %vm394, %v393
          %396 = vst.msk [vmem:[%s278] sm:$0x3] %vm394, %v369
        $region44: #{tpu_custom_call.1} parent=35 // pred_fallthru
          _
        %s397 = sand.u32 %s144, 1
        %s398 = scalar_lea.sflag [#allocation4], %s397
        %s399 = sand.u32 %s144, 1
        %s400 = smul.addr %s399, 2
        %s401 = scalar_lea.vmem [#allocation3], %s400
        %s402 = sand.u32 %s170, 1
        %s403 = scalar_lea.sflag [#allocation6], %s402
        %s404 = sand.u32 %s170, 1
        %s405 = smul.addr %s404, 2
        %s406 = scalar_lea.vmem [#allocation5], %s405
        // Predicated region
        $region45: #{tpu_custom_call.1} parent=35 // pred_check
          %p407 = pneg %p154
        $region46: #{tpu_custom_call.1} parent=35 // pred_check_branch
          %409 = sbr.rel (%p407) target = $region48
        $region47: #{tpu_custom_call.1} parent=35 // pred_region
          %411 = vsyncadd %s398, 0
          %s412 = smul.addr %s27, 2
          %s413 = scalar_lea.hbm %s4, %s412
          %s415 = sshll.u32 %s401, 4
          %s416 = int_to_ptr.vmem [resolvable:$true] %s415
          %s417 = sshll.u32 %s413, 4
          %s418 = int_to_ptr.hbm [resolvable:$true] %s417
          %420 = dma.vmem_to_hbm [thread:$0]  %s416, 32, %s418, %s398
        $region48: #{tpu_custom_call.1} parent=35 // pred_fallthru
          _
        // Predicated region
        $region49: #{tpu_custom_call.1} parent=35 // pred_check
          %p421 = pneg %p180
        $region50: #{tpu_custom_call.1} parent=35 // pred_check_branch
          %423 = sbr.rel (%p421) target = $region52
        $region51: #{tpu_custom_call.1} parent=35 // pred_region
          %425 = vsyncadd %s403, 0
          %s426 = smul.addr %s27, 2
          %s427 = scalar_lea.hbm %s5, %s426
          %s429 = sshll.u32 %s406, 4
          %s430 = int_to_ptr.vmem [resolvable:$true] %s429
          %s431 = sshll.u32 %s427, 4
          %s432 = int_to_ptr.hbm [resolvable:$true] %s431
          %434 = dma.vmem_to_hbm [thread:$0]  %s430, 32, %s432, %s403
        $region52: #{tpu_custom_call.1} parent=35 // pred_fallthru
          _
      $region36: #{tpu_custom_call.1} parent=5 // pred_fallthru
        _
      %p435 = scmp.le.s32.totalorder 2, %s18
      // Predicated region
      $region53: #{tpu_custom_call.1} parent=5 // pred_check
        %p436 = pneg %p435
      $region54: #{tpu_custom_call.1} parent=5 // pred_check_branch
        %438 = sbr.rel (%p436) target = $region56
      $region55: #{tpu_custom_call.1} parent=5 // pred_region
        %s439 = ssub.s32 %s18, 2
        // Predicated region
        $region57: #{tpu_custom_call.1} parent=55 // pred_check
          %p440 = pneg %p160
        $region58: #{tpu_custom_call.1} parent=55 // pred_check_branch
          %442 = sbr.rel (%p440) target = $region60
        $region59: #{tpu_custom_call.1} parent=55 // pred_region
          %s443 = sand.u32 %s145, 1
          %s444 = scalar_lea.sflag [#allocation4], %s443
          %s445 = sand.u32 %s145, 1
          %s446 = smul.addr %s445, 2
          %s447 = scalar_lea.vmem [#allocation3], %s446
          %449 = dma.done %s444, 32
        $region60: #{tpu_custom_call.1} parent=55 // pred_fallthru
          _
        // Predicated region
        $region61: #{tpu_custom_call.1} parent=55 // pred_check
          %p450 = pneg %p186
        $region62: #{tpu_custom_call.1} parent=55 // pred_check_branch
          %452 = sbr.rel (%p450) target = $region64
        $region63: #{tpu_custom_call.1} parent=55 // pred_region
          %s453 = sand.u32 %s171, 1
          %s454 = scalar_lea.sflag [#allocation6], %s453
          %s455 = sand.u32 %s171, 1
          %s456 = smul.addr %s455, 2
          %s457 = scalar_lea.vmem [#allocation5], %s456
          %459 = dma.done %s454, 32
        $region64: #{tpu_custom_call.1} parent=55 // pred_fallthru
          _
      $region56: #{tpu_custom_call.1} parent=5 // pred_fallthru
        _
    $region6: #{tpu_custom_call.1} parent=1 // loop_footer
      %s22 = sadd.s32 1, %s18
    $region7: #{tpu_custom_call.1} parent=1 // loop_footer_branch
      %17 = sbr.rel target = $region3
    $region8: #{tpu_custom_call.1} parent=1 // loop_exit
      _
    %460 = vsyncpa [#allocation4], 1
    %s461 = scalar_lea.sflag [#allocation4], 1
    %462 = vsyncpa %s461, 1
    %463 = vsyncpa [#allocation6], 1
    %s464 = scalar_lea.sflag [#allocation6], 1
    %465 = vsyncpa %s464, 1

</llo_original>
